<compile_context>
chip_gen: v6e
topology: v6e:2x2x1
jax: 0.10.0
libtpu: 0.0.40
codegen_flags: <defaults>
</compile_context>

<pallas_src>
import functools

import jax
import jax.numpy as jnp
from jax.experimental import pallas as pl
from jax.experimental.pallas import tpu as pltpu


_PAD_LARGE = 1.0e30  # sentinel "squared distance" for padded rows/cols


def _chamfer_kernel(x_ref, yt_ref, o_ref,
                    row_ref, col_ref, d1_ref, d2_ref,
                    *, p1, p2):
    # x_ref:   (bb, tp1, K)   augmented x tile  [-2*x | xx | 1]   (f32)
    # yt_ref:  (bb, K,  tp2)  augmented y^T tile [ y ; 1 ; yy ]   (f32)
    # o_ref:   (bb, 1, 1)     per-batch chamfer cost (f32)
    # row_ref: (bb, tp1, 128)    lane-dense running x->y partial mins
    # col_ref: (nj, bb, 8, tp2)  sublane-dense running y->x partial mins
    # d1_ref / d2_ref: (bb, 1, 1) sum-of-min-distance accumulators
    i = pl.program_id(1)
    j = pl.program_id(2)
    ni = pl.num_programs(1)
    nj = pl.num_programs(2)

    bb, tp1, _ = row_ref.shape
    tp2 = col_ref.shape[3]

    # Zero the per-batch-block scalar accumulators at the first (i, j) step.
    @pl.when((i == 0) & (j == 0))
    def _():
        d1_ref[...] = jnp.zeros_like(d1_ref)
        d2_ref[...] = jnp.zeros_like(d2_ref)

    # Squared pairwise distances straight off the MXU (norm terms folded into
    # the augmented contraction dim) — no broadcast-add passes over the tile.
    m = jnp.einsum('bpk,bkq->bpq', x_ref[...], yt_ref[...],
                   preferred_element_type=jnp.float32)      # (bb, tp1, tp2)

    # ---- x -> y direction: lane-chunk partial mins (pure VPU; XLU deferred).
    rpart = m[:, :, 0:128]
    for c in range(1, tp2 // 128):
        rpart = jnp.minimum(rpart, m[:, :, c * 128:(c + 1) * 128])

    @pl.when(j == 0)
    def _():
        row_ref[...] = jnp.full(row_ref.shape, jnp.inf, row_ref.dtype)

    row_ref[...] = jnp.minimum(row_ref[...], rpart)

    # ---- y -> x direction: 8-sublane partial mins via a layout-preserving
    # reshape + VPU min over vreg rows (cross-sublane XLU reduce deferred).
    cpart = jnp.min(m.reshape(bb, tp1 // 8, 8, tp2), axis=1)  # (bb, 8, tp2)

    @pl.when(i == 0)
    def _():
        col_ref[j] = jnp.full((bb, 8, tp2), jnp.inf, col_ref.dtype)

    col_ref[j] = jnp.minimum(col_ref[j], cpart)

    # ---- finalize x->y for this P1 tile once all P2 tiles have been seen:
    # cross-lane reduce + clamp + sqrt (+ pad mask) on a (tp1,)-sized vector.
    @pl.when(j == nj - 1)
    def _():
        rmin = jnp.min(row_ref[...], axis=-1, keepdims=True)   # (bb, tp1, 1)
        d = jnp.sqrt(jnp.maximum(rmin, 0.0))
        if p1 % tp1 != 0:  # static: only emitted when P1 was padded
            ridx = jax.lax.broadcasted_iota(jnp.int32, d.shape, 1) + i * tp1
            d = jnp.where(ridx < p1, d, 0.0)
        d1_ref[...] += jnp.sum(d, axis=1, keepdims=True)

    # ---- finalize y->x for this P2 tile once all P1 tiles have been seen.
    @pl.when(i == ni - 1)
    def _():
        cmin = jnp.min(col_ref[j], axis=1, keepdims=True)       # (bb, 1, tp2)
        c = jnp.sqrt(jnp.maximum(cmin, 0.0))
        if p2 % tp2 != 0:  # static: only emitted when P2 was padded
            cidx = jax.lax.broadcasted_iota(jnp.int32, c.shape, 2) + j * tp2
            c = jnp.where(cidx < p2, c, 0.0)
        d2_ref[...] += jnp.sum(c, axis=2, keepdims=True)

    # Per-batch chamfer cost at the final step of this batch block.
    @pl.when((i == ni - 1) & (j == nj - 1))
    def _():
        cost = (d1_ref[...] * (1.0 / p1) + d2_ref[...] * (1.0 / p2)) * 0.5
        o_ref[...] = cost.astype(o_ref.dtype)


def _round_up(a, b):
    return -(-a // b) * b


def _pick_batch_block(n, p1p, p2p):
    """Batch several tiny clouds per grid step (amortize per-step overhead).

    VMEM-limited (keep the (bb, tp1, tp2) f32 intermediate under ~8 MiB)
    instead of a hard cap of 8; keep >= 2 steps on the batch axis so it can
    still shard across cores."""
    budget = max(1, (8 * 1024 * 1024) // (4 * p1p * p2p))
    cap = max(1, min(max(1, n // 2), budget, 64))
    for bb in range(cap, 0, -1):
        if n % bb == 0:
            return bb
    return 1


def _vmem_limit_bytes(m_tile_bytes):
    """Scoped-VMEM request sized to the pairwise tile, clamped to physical."""
    want = max(32 * 1024 * 1024, 4 * m_tile_bytes + 8 * 1024 * 1024)
    try:
        phys = int(pltpu.get_tpu_info().vmem_capacity_bytes)
    except Exception:
        phys = 64 * 1024 * 1024  # v7x has the smallest per-core VMEM
    return int(max(16 * 1024 * 1024, min(want, phys - 8 * 1024 * 1024)))


@functools.partial(jax.jit, static_argnames=("reduction", "tp1_cap", "tp2_cap"))
def chamfer_distance(x, y, reduction="none", tp1_cap=1024, tp2_cap=2048):
    """x: (N, P1, D), y: (N, P2, D) -> (N,) or scalar for 'mean'/'sum'."""
    N, P1, D = x.shape
    _, P2, D2 = y.shape
    assert D == D2, "x and y must share the coordinate dimension"

    if N == 0:
        # Matches the PyTorch early-exit: return x.sum()
        return jnp.sum(x)

    # --- tile picks: pad-to-multiple (never a full ragged-dim fallback).
    tp1_cap = max(8, (tp1_cap // 8) * 8)
    tp2_cap = max(128, (tp2_cap // 128) * 128)
    tp1 = min(tp1_cap, _round_up(P1, 8))
    tp2 = min(tp2_cap, _round_up(P2, 128))
    P1p = _round_up(P1, tp1)
    P2p = _round_up(P2, tp2)
    ni = P1p // tp1
    nj = P2p // tp2
    bb = _pick_batch_block(N, P1p, P2p) if (ni == 1 and nj == 1) else 1

    f32 = jnp.float32
    xf = x.astype(f32)
    yf = y.astype(f32)

    # Augmented operands (wrapper-side XLA): fold |x|^2 and |y|^2 into the MXU
    # contraction.  Padded rows/cols get a huge sentinel in their norm slot so
    # they never win a min against real points; padded/padded pairs give 0 and
    # are masked out of the sums at finalize.
    xx = jnp.sum(xf * xf, axis=-1, keepdims=True)                  # (N, P1, 1)
    x_aug = jnp.concatenate([-2.0 * xf, xx, jnp.ones_like(xx)], axis=-1)
    if P1p != P1:
        padr = jnp.zeros((N, P1p - P1, D + 2), f32).at[..., D].set(_PAD_LARGE)
        x_aug = jnp.concatenate([x_aug, padr], axis=1)             # (N, P1p, D+2)

    yy = jnp.sum(yf * yf, axis=-1, keepdims=True)                  # (N, P2, 1)
    y_aug = jnp.concatenate([yf, jnp.ones_like(yy), yy], axis=-1)  # (N, P2, D+2)
    if P2p != P2:
        padc = jnp.zeros((N, P2p - P2, D + 2), f32).at[..., D + 1].set(_PAD_LARGE)
        y_aug = jnp.concatenate([y_aug, padc], axis=1)             # (N, P2p, D+2)
    # Transpose in the wrapper (free layout plumbing): no in-kernel transposes.
    y_aug_t = jnp.swapaxes(y_aug, 1, 2)                            # (N, D+2, P2p)

    K = D + 2
    m_tile_bytes = bb * tp1 * tp2 * 4

    kernel = functools.partial(_chamfer_kernel, p1=P1, p2=P2)

    per_batch = pl.pallas_call(
        kernel,
        out_shape=jax.ShapeDtypeStruct((N, 1, 1), jnp.float32),
        grid_spec=pltpu.PrefetchScalarGridSpec(
            num_scalar_prefetch=0,
            grid=(N // bb, ni, nj),
            in_specs=[
                pl.BlockSpec((bb, tp1, K), lambda n, i, j: (n, i, 0)),
                pl.BlockSpec((bb, K, tp2), lambda n, i, j: (n, 0, j)),
            ],
            out_specs=pl.BlockSpec((bb, 1, 1), lambda n, i, j: (n, 0, 0)),
            scratch_shapes=[
                pltpu.VMEM((bb, tp1, 128), jnp.float32),    # x->y lane-chunk mins
                pltpu.VMEM((nj, bb, 8, tp2), jnp.float32),  # y->x sublane mins
                pltpu.VMEM((bb, 1, 1), jnp.float32),        # d1 accumulator
                pltpu.VMEM((bb, 1, 1), jnp.float32),        # d2 accumulator
            ],
        ),
        compiler_params=pltpu.CompilerParams(
            dimension_semantics=("parallel", "arbitrary", "arbitrary"),
            vmem_limit_bytes=_vmem_limit_bytes(m_tile_bytes),
        ),
    )(x_aug, y_aug_t)

    cost = per_batch[:, 0, 0].astype(x.dtype)                      # (N,)
    if reduction == "mean":
        cost = jnp.mean(cost)
    elif reduction == "sum":
        cost = jnp.sum(cost)
    return cost


def _chamfer_reference(x, y, reduction="none"):
    """Pure-JAX reference matching the PyTorch module."""
    diff = x[:, :, None, :] - y[:, None, :, :]
    C = jnp.sqrt(jnp.sum(diff * diff, axis=-1))
    d1 = jnp.mean(jnp.min(C, axis=-1), axis=-1)
    d2 = jnp.mean(jnp.min(C, axis=-2), axis=-1)
    cost = (d1 + d2) / 2.0
    if reduction == "mean":
        cost = jnp.mean(cost)
    elif reduction == "sum":
        cost = jnp.sum(cost)
    return cost


if __name__ == "__main__":
    key = jax.random.PRNGKey(0)
    kx, ky, kx2, ky2, kx3, ky3 = jax.random.split(key, 6)

    # Case 1: small clouds, single tile per batch element.
    N, P1, P2, D = 2, 64, 128, 8
    x = jax.random.normal(kx, (N, P1, D), dtype=jnp.float32)
    y = jax.random.normal(ky, (N, P2, D), dtype=jnp.float32)
    out = jax.block_until_ready(chamfer_distance(x, y, reduction="none"))
    ref = _chamfer_reference(x, y)
    assert out.shape == (N,)
    assert jnp.allclose(out, ref, rtol=1e-4, atol=1e-4), (out, ref)

    out_mean = jax.block_until_ready(chamfer_distance(x, y, reduction="mean"))
    out_sum = jax.block_until_ready(chamfer_distance(x, y, reduction="sum"))
    assert out_mean.shape == () and out_sum.shape == ()
    assert jnp.allclose(out_mean, jnp.mean(ref), rtol=1e-4, atol=1e-4)
    assert jnp.allclose(out_sum, jnp.sum(ref), rtol=1e-4, atol=1e-4)

    # Case 2: ragged cloud sizes + multi-tile grid (exercises padding/masking
    # and the running-min accumulators) with small tile caps.
    N2, P1b, P2b, Db = 1, 200, 260, 3
    x2 = jax.random.normal(kx2, (N2, P1b, Db), dtype=jnp.float32)
    y2 = jax.random.normal(ky2, (N2, P2b, Db), dtype=jnp.float32)
    out2 = jax.block_until_ready(
        chamfer_distance(x2, y2, tp1_cap=64, tp2_cap=128))
    ref2 = _chamfer_reference(x2, y2)
    assert jnp.allclose(out2, ref2, rtol=1e-4, atol=1e-4), (out2, ref2)

    # Case 3: many tiny clouds (bb > 1 batch blocking) + lane padding.
    N3, P1c, P2c, Dc = 8, 32, 48, 3
    x3 = jax.random.normal(kx3, (N3, P1c, Dc), dtype=jnp.float32)
    y3 = jax.random.normal(ky3, (N3, P2c, Dc), dtype=jnp.float32)
    out3 = jax.block_until_ready(chamfer_distance(x3, y3))
    ref3 = _chamfer_reference(x3, y3)
    assert jnp.allclose(out3, ref3, rtol=1e-4, atol=1e-4), (out3, ref3)

    print("KERNEL_OK")
</pallas_src>

<mosaic_0001>
module attributes {stable_mosaic.version = 11 : i64} {
  func.func @_chamfer_kernel(%arg0: i32, %arg1: i32, %arg2: i32, %arg3: memref<1x64x10xf32, #tpu.memory_space<vmem>>, %arg4: memref<1x10x128xf32, #tpu.memory_space<vmem>>, %arg5: memref<1x1x1xf32, #tpu.memory_space<vmem>>, %arg6: memref<1x64x128xf32, #tpu.memory_space<vmem>>, %arg7: memref<1x1x8x128xf32, #tpu.memory_space<vmem>>, %arg8: memref<1x1x1xf32, #tpu.memory_space<vmem>>, %arg9: memref<1x1x1xf32, #tpu.memory_space<vmem>>) attributes {dimension_semantics = [#tpu.dimension_semantics<parallel>, #tpu.dimension_semantics<arbitrary>, #tpu.dimension_semantics<arbitrary>], iteration_bounds = array<i64: 2, 1, 1>, scalar_prefetch = 0 : i64, scratch_operands = 4 : i64, tpu.core_type = #tpu.core_type<tc>, window_params = [{transform_indices = @transform_0, window_bounds = array<i64: 1, 64, 10>}, {transform_indices = @transform_1, window_bounds = array<i64: 1, 10, 128>}, {transform_indices = @transform_2, window_bounds = array<i64: 1, 1, 1>}]} {
    %c0_i32 = arith.constant 0 : i32
    %0 = arith.cmpi eq, %arg1, %c0_i32 : i32
    %c0_i32_0 = arith.constant 0 : i32
    %1 = arith.cmpi eq, %arg2, %c0_i32_0 : i32
    %2 = arith.andi %0, %1 : i1
    %3 = arith.extui %2 : i1 to i32
    %c0_i32_1 = arith.constant 0 : i32
    %4 = arith.cmpi ne, %3, %c0_i32_1 : i32
    scf.if %4 {
      %cst_31 = arith.constant 0.000000e+00 : f32
      %38 = vector.broadcast %cst_31 : f32 to vector<1x1x1xf32>
      %c0_32 = arith.constant 0 : index
      %c0_33 = arith.constant 0 : index
      %c0_34 = arith.constant 0 : index
      %39 = vector.load %arg8[%c0_32, %c0_33, %c0_34] : memref<1x1x1xf32, #tpu.memory_space<vmem>>, vector<1x1x1xf32>
      tpu.vector_store %arg8[%c0_32, %c0_33, %c0_34], %38 {strides = array<i32>} : memref<1x1x1xf32, #tpu.memory_space<vmem>>, vector<1x1x1xf32>,
      %cst_35 = arith.constant 0.000000e+00 : f32
      %40 = vector.broadcast %cst_35 : f32 to vector<1x1x1xf32>
      %c0_36 = arith.constant 0 : index
      %c0_37 = arith.constant 0 : index
      %c0_38 = arith.constant 0 : index
      %41 = vector.load %arg9[%c0_36, %c0_37, %c0_38] : memref<1x1x1xf32, #tpu.memory_space<vmem>>, vector<1x1x1xf32>
      tpu.vector_store %arg9[%c0_36, %c0_37, %c0_38], %40 {strides = array<i32>} : memref<1x1x1xf32, #tpu.memory_space<vmem>>, vector<1x1x1xf32>,
    } else {
    }
    %c0 = arith.constant 0 : index
    %c0_2 = arith.constant 0 : index
    %c0_3 = arith.constant 0 : index
    %5 = vector.load %arg3[%c0, %c0_2, %c0_3] : memref<1x64x10xf32, #tpu.memory_space<vmem>>, vector<1x64x10xf32>
    %c0_4 = arith.constant 0 : index
    %c0_5 = arith.constant 0 : index
    %c0_6 = arith.constant 0 : index
    %6 = vector.load %arg4[%c0_4, %c0_5, %c0_6] : memref<1x10x128xf32, #tpu.memory_space<vmem>>, vector<1x10x128xf32>
    "tpu.trace_start"() <{level = 10 : i32, message = "bpk,bkq->bpq"}> : () -> ()
    %cst = arith.constant dense<0.000000e+00> : vector<1x64x128xf32>
    %7 = tpu.matmul %5, %6, %cst {dimension_numbers = #tpu.dot_dimension_numbers<[2], [1], [1], [2], [0, 0, 0, 1, 1, 2], [0], [0]>} : vector<1x64x10xf32>, vector<1x10x128xf32>, vector<1x64x128xf32> -> vector<1x64x128xf32>
    %c0_i32_7 = arith.constant 0 : i32
    "tpu.trace_stop"() : () -> ()
    %8 = arith.cmpi eq, %arg2, %c0_i32_7 : i32
    %9 = arith.extui %8 : i1 to i32
    %c0_i32_8 = arith.constant 0 : i32
    %10 = arith.cmpi ne, %9, %c0_i32_8 : i32
    scf.if %10 {
      %cst_31 = arith.constant 0x7F800000 : f32
      %38 = vector.broadcast %cst_31 : f32 to vector<1x64x128xf32>
      %c0_32 = arith.constant 0 : index
      %c0_33 = arith.constant 0 : index
      %c0_34 = arith.constant 0 : index
      %39 = vector.load %arg6[%c0_32, %c0_33, %c0_34] : memref<1x64x128xf32, #tpu.memory_space<vmem>>, vector<1x64x128xf32>
      tpu.vector_store %arg6[%c0_32, %c0_33, %c0_34], %38 {strides = array<i32>} : memref<1x64x128xf32, #tpu.memory_space<vmem>>, vector<1x64x128xf32>,
    } else {
    }
    %c0_9 = arith.constant 0 : index
    %c0_10 = arith.constant 0 : index
    %c0_11 = arith.constant 0 : index
    %11 = vector.load %arg6[%c0_9, %c0_10, %c0_11] : memref<1x64x128xf32, #tpu.memory_space<vmem>>, vector<1x64x128xf32>
    %12 = arith.minimumf %11, %7 : vector<1x64x128xf32>
    %c0_12 = arith.constant 0 : index
    %c0_13 = arith.constant 0 : index
    %c0_14 = arith.constant 0 : index
    %13 = vector.load %arg6[%c0_12, %c0_13, %c0_14] : memref<1x64x128xf32, #tpu.memory_space<vmem>>, vector<1x64x128xf32>
    tpu.vector_store %arg6[%c0_12, %c0_13, %c0_14], %12 {strides = array<i32>} : memref<1x64x128xf32, #tpu.memory_space<vmem>>, vector<1x64x128xf32>,
    %14 = vector.shape_cast %7 : vector<1x64x128xf32> to vector<1x8x8x128xf32>
    %cst_15 = arith.constant dense<0x7F800000> : vector<1x8x128xf32>
    %15 = vector.multi_reduction <minimumf>, %14, %cst_15 [1] : vector<1x8x8x128xf32> to vector<1x8x128xf32>
    %c0_i32_16 = arith.constant 0 : i32
    %16 = arith.cmpi eq, %arg1, %c0_i32_16 : i32
    %17 = arith.extui %16 : i1 to i32
    %c0_i32_17 = arith.constant 0 : i32
    %18 = arith.cmpi ne, %17, %c0_i32_17 : i32
    scf.if %18 {
      %cst_31 = arith.constant 0x7F800000 : f32
      %38 = vector.broadcast %cst_31 : f32 to vector<1x8x128xf32>
      %39 = arith.index_cast %arg2 : i32 to index
      %c0_32 = arith.constant 0 : index
      %c0_33 = arith.constant 0 : index
      %c0_34 = arith.constant 0 : index
      %40 = vector.load %arg7[%39, %c0_32, %c0_33, %c0_34] : memref<1x1x8x128xf32, #tpu.memory_space<vmem>>, vector<1x1x8x128xf32>
      %41 = vector.shape_cast %40 : vector<1x1x8x128xf32> to vector<1x8x128xf32>
      %42 = vector.shape_cast %38 : vector<1x8x128xf32> to vector<1x1x8x128xf32>
      tpu.vector_store %arg7[%39, %c0_32, %c0_33, %c0_34], %42 {strides = array<i32>} : memref<1x1x8x128xf32, #tpu.memory_space<vmem>>, vector<1x1x8x128xf32>,
    } else {
    }
    %19 = arith.index_cast %arg2 : i32 to index
    %c0_18 = arith.constant 0 : index
    %c0_19 = arith.constant 0 : index
    %c0_20 = arith.constant 0 : index
    %20 = vector.load %arg7[%19, %c0_18, %c0_19, %c0_20] : memref<1x1x8x128xf32, #tpu.memory_space<vmem>>, vector<1x1x8x128xf32>
    %21 = vector.shape_cast %20 : vector<1x1x8x128xf32> to vector<1x8x128xf32>
    %22 = arith.minimumf %21, %15 : vector<1x8x128xf32>
    %23 = arith.index_cast %arg2 : i32 to index
    %c0_21 = arith.constant 0 : index
    %c0_22 = arith.constant 0 : index
    %c0_23 = arith.constant 0 : index
    %24 = vector.load %arg7[%23, %c0_21, %c0_22, %c0_23] : memref<1x1x8x128xf32, #tpu.memory_space<vmem>>, vector<1x1x8x128xf32>
    %25 = vector.shape_cast %24 : vector<1x1x8x128xf32> to vector<1x8x128xf32>
    %26 = vector.shape_cast %22 : vector<1x8x128xf32> to vector<1x1x8x128xf32>
    tpu.vector_store %arg7[%23, %c0_21, %c0_22, %c0_23], %26 {strides = array<i32>} : memref<1x1x8x128xf32, #tpu.memory_space<vmem>>, vector<1x1x8x128xf32>,
    %c0_i32_24 = arith.constant 0 : i32
    %27 = arith.cmpi eq, %arg2, %c0_i32_24 : i32
    %28 = arith.extui %27 : i1 to i32
    %c0_i32_25 = arith.constant 0 : i32
    %29 = arith.cmpi ne, %28, %c0_i32_25 : i32
    scf.if %29 {
      %c0_31 = arith.constant 0 : index
      %c0_32 = arith.constant 0 : index
      %c0_33 = arith.constant 0 : index
      %38 = vector.load %arg6[%c0_31, %c0_32, %c0_33] : memref<1x64x128xf32, #tpu.memory_space<vmem>>, vector<1x64x128xf32>
      %cst_34 = arith.constant dense<0x7F800000> : vector<1x64xf32>
      %39 = vector.multi_reduction <minimumf>, %38, %cst_34 [2] : vector<1x64x128xf32> to vector<1x64xf32>
      %40 = vector.shape_cast %39 : vector<1x64xf32> to vector<1x64x1xf32>
      %cst_35 = arith.constant 0.000000e+00 : f32
      %41 = vector.broadcast %cst_35 : f32 to vector<1x64x1xf32>
      %42 = arith.maximumf %40, %41 : vector<1x64x1xf32>
      %43 = math.sqrt %42 : vector<1x64x1xf32>
      %c0_36 = arith.constant 0 : index
      %c0_37 = arith.constant 0 : index
      %c0_38 = arith.constant 0 : index
      %44 = vector.load %arg8[%c0_36, %c0_37, %c0_38] : memref<1x1x1xf32, #tpu.memory_space<vmem>>, vector<1x1x1xf32>
      %cst_39 = arith.constant dense<0.000000e+00> : vector<1x1xf32>
      %45 = vector.multi_reduction <add>, %43, %cst_39 [1] : vector<1x64x1xf32> to vector<1x1xf32>
      %46 = vector.shape_cast %45 : vector<1x1xf32> to vector<1x1x1xf32>
      %47 = arith.addf %44, %46 : vector<1x1x1xf32>
      %c0_40 = arith.constant 0 : index
      %c0_41 = arith.constant 0 : index
      %c0_42 = arith.constant 0 : index
      %48 = vector.load %arg8[%c0_40, %c0_41, %c0_42] : memref<1x1x1xf32, #tpu.memory_space<vmem>>, vector<1x1x1xf32>
      tpu.vector_store %arg8[%c0_40, %c0_41, %c0_42], %47 {strides = array<i32>} : memref<1x1x1xf32, #tpu.memory_space<vmem>>, vector<1x1x1xf32>,
    } else {
    }
    %c0_i32_26 = arith.constant 0 : i32
    %30 = arith.cmpi eq, %arg1, %c0_i32_26 : i32
    %31 = arith.extui %30 : i1 to i32
    %c0_i32_27 = arith.constant 0 : i32
    %32 = arith.cmpi ne, %31, %c0_i32_27 : i32
    scf.if %32 {
      %38 = arith.index_cast %arg2 : i32 to index
      %c0_31 = arith.constant 0 : index
      %c0_32 = arith.constant 0 : index
      %c0_33 = arith.constant 0 : index
      %39 = vector.load %arg7[%38, %c0_31, %c0_32, %c0_33] : memref<1x1x8x128xf32, #tpu.memory_space<vmem>>, vector<1x1x8x128xf32>
      %40 = vector.shape_cast %39 : vector<1x1x8x128xf32> to vector<1x8x128xf32>
      %cst_34 = arith.constant dense<0x7F800000> : vector<1x128xf32>
      %41 = vector.multi_reduction <minimumf>, %40, %cst_34 [1] : vector<1x8x128xf32> to vector<1x128xf32>
      %42 = vector.shape_cast %41 : vector<1x128xf32> to vector<1x1x128xf32>
      %cst_35 = arith.constant 0.000000e+00 : f32
      %43 = vector.broadcast %cst_35 : f32 to vector<1x1x128xf32>
      %44 = arith.maximumf %42, %43 : vector<1x1x128xf32>
      %45 = math.sqrt %44 : vector<1x1x128xf32>
      %c0_36 = arith.constant 0 : index
      %c0_37 = arith.constant 0 : index
      %c0_38 = arith.constant 0 : index
      %46 = vector.load %arg9[%c0_36, %c0_37, %c0_38] : memref<1x1x1xf32, #tpu.memory_space<vmem>>, vector<1x1x1xf32>
      %cst_39 = arith.constant dense<0.000000e+00> : vector<1x1xf32>
      %47 = vector.multi_reduction <add>, %45, %cst_39 [2] : vector<1x1x128xf32> to vector<1x1xf32>
      %48 = vector.shape_cast %47 : vector<1x1xf32> to vector<1x1x1xf32>
      %49 = arith.addf %46, %48 : vector<1x1x1xf32>
      %c0_40 = arith.constant 0 : index
      %c0_41 = arith.constant 0 : index
      %c0_42 = arith.constant 0 : index
      %50 = vector.load %arg9[%c0_40, %c0_41, %c0_42] : memref<1x1x1xf32, #tpu.memory_space<vmem>>, vector<1x1x1xf32>
      tpu.vector_store %arg9[%c0_40, %c0_41, %c0_42], %49 {strides = array<i32>} : memref<1x1x1xf32, #tpu.memory_space<vmem>>, vector<1x1x1xf32>,
    } else {
    }
    %c0_i32_28 = arith.constant 0 : i32
    %33 = arith.cmpi eq, %arg1, %c0_i32_28 : i32
    %c0_i32_29 = arith.constant 0 : i32
    %34 = arith.cmpi eq, %arg2, %c0_i32_29 : i32
    %35 = arith.andi %33, %34 : i1
    %36 = arith.extui %35 : i1 to i32
    %c0_i32_30 = arith.constant 0 : i32
    %37 = arith.cmpi ne, %36, %c0_i32_30 : i32
    scf.if %37 {
      %c0_31 = arith.constant 0 : index
      %c0_32 = arith.constant 0 : index
      %c0_33 = arith.constant 0 : index
      %38 = vector.load %arg8[%c0_31, %c0_32, %c0_33] : memref<1x1x1xf32, #tpu.memory_space<vmem>>, vector<1x1x1xf32>
      %cst_34 = arith.constant 1.562500e-02 : f32
      %39 = vector.broadcast %cst_34 : f32 to vector<1x1x1xf32>
      %40 = arith.mulf %38, %39 : vector<1x1x1xf32>
      %c0_35 = arith.constant 0 : index
      %c0_36 = arith.constant 0 : index
      %c0_37 = arith.constant 0 : index
      %41 = vector.load %arg9[%c0_35, %c0_36, %c0_37] : memref<1x1x1xf32, #tpu.memory_space<vmem>>, vector<1x1x1xf32>
      %cst_38 = arith.constant 7.812500e-03 : f32
      %42 = vector.broadcast %cst_38 : f32 to vector<1x1x1xf32>
      %43 = arith.mulf %41, %42 : vector<1x1x1xf32>
      %44 = arith.addf %40, %43 : vector<1x1x1xf32>
      %cst_39 = arith.constant 5.000000e-01 : f32
      %45 = vector.broadcast %cst_39 : f32 to vector<1x1x1xf32>
      %46 = arith.mulf %44, %45 : vector<1x1x1xf32>
      %c0_40 = arith.constant 0 : index
      %c0_41 = arith.constant 0 : index
      %c0_42 = arith.constant 0 : index
      %47 = vector.load %arg5[%c0_40, %c0_41, %c0_42] : memref<1x1x1xf32, #tpu.memory_space<vmem>>, vector<1x1x1xf32>
      tpu.vector_store %arg5[%c0_40, %c0_41, %c0_42], %46 {strides = array<i32>} : memref<1x1x1xf32, #tpu.memory_space<vmem>>, vector<1x1x1xf32>,
    } else {
    }
    return
  }
  func.func @transform_0(%arg0: i32, %arg1: i32, %arg2: i32) -> (i32, i32, i32) {
    %c0_i32 = arith.constant 0 : i32
    %c0_i32_0 = arith.constant 0 : i32
    return %arg0, %arg1, %c0_i32 : i32, i32, i32
  }
  func.func @transform_1(%arg0: i32, %arg1: i32, %arg2: i32) -> (i32, i32, i32) {
    %c0_i32 = arith.constant 0 : i32
    %c0_i32_0 = arith.constant 0 : i32
    return %arg0, %c0_i32, %arg2 : i32, i32, i32
  }
  func.func @transform_2(%arg0: i32, %arg1: i32, %arg2: i32) -> (i32, i32, i32) {
    %c0_i32 = arith.constant 0 : i32
    %c0_i32_0 = arith.constant 0 : i32
    %c0_i32_1 = arith.constant 0 : i32
    return %arg0, %c0_i32, %c0_i32_0 : i32, i32, i32
  }
}

</mosaic_0001>

<llo_original>
// kernel: chamfer_distance.1
$region0: #{chamfer_distance.1}
  #allocation0 [shape = 'u32[]', space=smem, size = 0x4, offset = 0x4, fixed_abs, tag = 'smem constant byte address 0x4 - core index']
  #allocation1 [shape = 'u32[144,128]{1,0:T(1,128)}', space=vmem, size = 0x12000, scoped, tag = 'internal scratch']
  #allocation2 [shape = 'f32[1,64,128]{2,1,0:T(8,128)}', space=vmem, size = 0x8000, scoped, tag = 'scratch operand']
  #allocation3 [shape = 'f32[1,1,8,128]{3,2,1,0:T(8,128)}', space=vmem, size = 0x1000, scoped, tag = 'scratch operand']
  #allocation4 [shape = 'f32[1,1,1]{2,1,0:T(1,128)}', space=vmem, size = 0x200, scoped, tag = 'scratch operand']
  #allocation5 [shape = 'f32[1,1,1]{2,1,0:T(1,128)}', space=vmem, size = 0x200, scoped, tag = 'scratch operand']
  %s0 = inlined_call_operand.vmem [shape: f32[2,64,10], index: 0, kind: input, shape index: {}]
  %s1 = inlined_call_operand.vmem [shape: f32[2,10,128], index: 1, kind: input, shape index: {}]
  %s2 = inlined_call_operand.vmem [shape: f32[2,1,1], index: 2, kind: output, shape index: {}]
  %s3 = sld [smem:[#allocation0]]
  $region65: #{chamfer_distance.1} parent=0
    _
  %s5 = ssub.s32 1, %s3
  %s6 = scalar_select 0, %s5, %s3
  loop: start=0, step=1, limit=4
  $region2: #{chamfer_distance.1} parent=0 // loop_pre_header
    _
  $region3: #{chamfer_distance.1} parent=0 // loop_header
    %s8 = sphi 0, %s12
    %p9 = scmp.ge.s32.totalorder %s8, 4
    %s15 = sphi 0, %s34
    %s16 = sphi 0, %s30
    %s17 = sphi 0, %s26
    %s18 = sphi 0, %s15
    %s19 = sphi 0, %s16
    %s20 = sphi 0, %s17
    %s21 = sphi 0, %s18
    %s22 = sphi 0, %s19
    %s23 = sphi 0, %s20
    %s39 = sphi 0, %s41
    %s42 = sphi 0, %s39
    %s43 = sphi 0, %s42
    %s59 = sphi 0, %s43
    %s67 = sphi 0, %s69
    %s70 = sphi 0, %s67
    %s71 = sphi 0, %s70
    %s87 = sphi 0, %s71
    %s93 = sphi 0, %s95
    %s96 = sphi 0, %s93
    %s97 = sphi 0, %s96
    %s113 = sphi 0, %s97
  $region4: #{chamfer_distance.1} parent=0 // loop_header_branch
    %11 = sbr.rel (%p9) target = $region8
  $region5: #{chamfer_distance.1} parent=0 // loop_body
    %s13 = ssub.s32 %s8, 1
    %s14 = ssub.s32 %s8, 2
    %s24 = sadd.s32 1, %s17
    %p25 = scmp.ge.s32.totalorder %s24, 1
    %s26 = scalar_select %p25, 0, %s24
    %s27 = sadd.s32 1, %s16
    %s28 = scalar_select %p25, %s27, %s16
    %p29 = scmp.ge.s32.totalorder %s28, 1
    %s30 = scalar_select %p29, 0, %s28
    %s31 = sadd.s32 1, %s15
    %s32 = scalar_select %p29, %s31, %s15
    %p33 = scmp.ge.s32.totalorder %s32, 2
    %s34 = scalar_select %p33, 0, %s32
    %s35 = ssub.s32 %s15, %s34
    %s36 = ssub.s32 %s16, %s30
    %s37 = sor.u32 %s35, %s36
    %p38 = scmp.eq.s32.totalorder %s37, 0
    %s40 = sadd.s32 %s39, 1
    %s41 = scalar_select %p38, %s39, %s40
    %p44 = pneg %p38
    %p45 = scmp.eq.s32.totalorder %s8, 1
    %p46 = por %p44, %p45
    %p47 = scmp.ne.s32.totalorder %s39, %s42
    %p48 = scmp.eq.s32.totalorder %s8, 0
    %p49 = por %p47, %p48
    %p50 = scmp.ne.s32.totalorder %s39, %s42
    %p51 = scmp.eq.s32.totalorder %s13, 1
    %p52 = por %p50, %p51
    %p53 = scmp.ne.s32.totalorder %s42, %s43
    %p54 = scmp.eq.s32.totalorder %s13, 0
    %p55 = por %p53, %p54
    %p56 = scmp.ne.s32.totalorder %s42, %s43
    %p57 = scmp.eq.s32.totalorder %s14, 1
    %p58 = por %p56, %p57
    %p60 = scmp.ne.s32.totalorder %s43, %s59
    %p61 = scmp.eq.s32.totalorder %s14, 0
    %p62 = por %p60, %p61
    %s63 = ssub.s32 %s15, %s34
    %s64 = ssub.s32 %s17, %s26
    %s65 = sor.u32 %s63, %s64
    %p66 = scmp.eq.s32.totalorder %s65, 0
    %s68 = sadd.s32 %s67, 1
    %s69 = scalar_select %p66, %s67, %s68
    %p72 = pneg %p66
    %p73 = scmp.eq.s32.totalorder %s8, 1
    %p74 = por %p72, %p73
    %p75 = scmp.ne.s32.totalorder %s67, %s70
    %p76 = scmp.eq.s32.totalorder %s8, 0
    %p77 = por %p75, %p76
    %p78 = scmp.ne.s32.totalorder %s67, %s70
    %p79 = scmp.eq.s32.totalorder %s13, 1
    %p80 = por %p78, %p79
    %p81 = scmp.ne.s32.totalorder %s70, %s71
    %p82 = scmp.eq.s32.totalorder %s13, 0
    %p83 = por %p81, %p82
    %p84 = scmp.ne.s32.totalorder %s70, %s71
    %p85 = scmp.eq.s32.totalorder %s14, 1
    %p86 = por %p84, %p85
    %p88 = scmp.ne.s32.totalorder %s71, %s87
    %p89 = scmp.eq.s32.totalorder %s14, 0
    %p90 = por %p88, %p89
    %s91 = ssub.s32 %s15, %s34
    %p92 = scmp.eq.s32.totalorder %s91, 0
    %s94 = sadd.s32 %s93, 1
    %s95 = scalar_select %p92, %s93, %s94
    %p98 = pneg %p92
    %p99 = scmp.eq.s32.totalorder %s8, 1
    %p100 = por %p98, %p99
    %p101 = scmp.ne.s32.totalorder %s93, %s96
    %p102 = scmp.eq.s32.totalorder %s8, 0
    %p103 = por %p101, %p102
    %p104 = scmp.ne.s32.totalorder %s93, %s96
    %p105 = scmp.eq.s32.totalorder %s13, 1
    %p106 = por %p104, %p105
    %p107 = scmp.ne.s32.totalorder %s96, %s97
    %p108 = scmp.eq.s32.totalorder %s13, 0
    %p109 = por %p107, %p108
    %p110 = scmp.ne.s32.totalorder %s96, %s97
    %p111 = scmp.eq.s32.totalorder %s14, 1
    %p112 = por %p110, %p111
    %p114 = scmp.ne.s32.totalorder %s97, %s113
    %p115 = scmp.eq.s32.totalorder %s14, 0
    %p116 = por %p114, %p115
    %p117 = scmp.le.s32.totalorder 1, %s8
    %p118 = scmp.lt.s32.totalorder %s8, 3
    %p119 = pnand %p117, %p118
    %p120 = pneg %p119
    // Predicated region
    $region9: #{chamfer_distance.1} parent=5 // pred_check
      _
    $region10: #{chamfer_distance.1} parent=5 // pred_check_branch
      %122 = sbr.rel (%p119) target = $region12
    $region11: #{chamfer_distance.1} parent=5 // pred_region
      %s123 = ssub.s32 %s8, 1
    $region12: #{chamfer_distance.1} parent=5 // pred_fallthru
      _
    %p124 = scmp.lt.s32.totalorder %s8, 2
    // Predicated region
    $region13: #{chamfer_distance.1} parent=5 // pred_check
      %p125 = pneg %p124
    $region14: #{chamfer_distance.1} parent=5 // pred_check_branch
      %127 = sbr.rel (%p125) target = $region16
    $region15: #{chamfer_distance.1} parent=5 // pred_region
      // Predicated region
      $region17: #{chamfer_distance.1} parent=15 // pred_check
        %p128 = pneg %p49
      $region18: #{chamfer_distance.1} parent=15 // pred_check_branch
        %130 = sbr.rel (%p128) target = $region20
      $region19: #{chamfer_distance.1} parent=15 // pred_region
        %s131 = smul.u32 8, %s16
        %p132 = scmp.lt.s32.totalorder %s15, 1
        %s133 = scalar_select %p132, %s15, 1
        %p134 = scmp.lt.s32.totalorder %s131, 7
        %s135 = scalar_select %p134, %s131, 7
        %s136 = smul.addr %s133, 8
        %s137 = sadd.s32 %s135, %s136
        %s138 = smul.addr %s137, 8
        %s139 = scalar_lea.vmem %s0, %s138
        %s140 = smul.u32 8, %s16
      $region20: #{chamfer_distance.1} parent=15 // pred_fallthru
        _
      // Predicated region
      $region21: #{chamfer_distance.1} parent=15 // pred_check
        %p141 = pneg %p77
      $region22: #{chamfer_distance.1} parent=15 // pred_check_branch
        %143 = sbr.rel (%p141) target = $region24
      $region23: #{chamfer_distance.1} parent=15 // pred_region
        %p144 = scmp.lt.s32.totalorder %s15, 1
        %s145 = scalar_select %p144, %s15, 1
        %p146 = scmp.lt.s32.totalorder %s17, 0
        %s147 = scalar_select %p146, %s17, 0
        %s148 = smul.addr %s145, 2
        %s149 = sadd.s32 %s147, %s148
        %s150 = smul.addr %s149, 8
        %s151 = scalar_lea.vmem %s1, %s150
      $region24: #{chamfer_distance.1} parent=15 // pred_fallthru
        _
    $region16: #{chamfer_distance.1} parent=5 // pred_fallthru
      _
    %p152 = scmp.le.s32.totalorder 1, %s8
    %p153 = scmp.lt.s32.totalorder %s8, 3
    %p154 = pnand %p152, %p153
    %p155 = pneg %p154
    // Predicated region
    $region25: #{chamfer_distance.1} parent=5 // pred_check
      _
    $region26: #{chamfer_distance.1} parent=5 // pred_check_branch
      %157 = sbr.rel (%p154) target = $region28
    $region27: #{chamfer_distance.1} parent=5 // pred_region
      %s158 = ssub.s32 %s8, 1
      %s159 = smul.u32 8, %s19
      %p160 = scmp.lt.s32.totalorder %s18, 1
      %s161 = scalar_select %p160, %s18, 1
      %p162 = scmp.lt.s32.totalorder %s159, 7
      %s163 = scalar_select %p162, %s159, 7
      %s164 = smul.addr %s161, 8
      %s165 = sadd.s32 %s163, %s164
      %s166 = smul.addr %s165, 8
      %s167 = scalar_lea.vmem %s0, %s166
      %p168 = pneg %p55
      %p169 = pneg %p52
      %p170 = scmp.lt.s32.totalorder %s18, 1
      %s171 = scalar_select %p170, %s18, 1
      %p172 = scmp.lt.s32.totalorder %s20, 0
      %s173 = scalar_select %p172, %s20, 0
      %s174 = smul.addr %s171, 2
      %s175 = sadd.s32 %s173, %s174
      %s176 = smul.addr %s175, 8
      %s177 = scalar_lea.vmem %s1, %s176
      %p178 = pneg %p83
      %p179 = pneg %p80
      %p180 = pneg %p109
      %p181 = pneg %p106
      %p182 = scmp.lt.s32.totalorder %s18, 1
      %s183 = scalar_select %p182, %s18, 1
      %s184 = scalar_lea.vmem %s2, %s183
      %s185 = smul.u32 8, %s19
      %p186 = scmp.lt.s32.totalorder %s18, 1
      %s187 = scalar_select %p186, %s18, 1
      %p188 = scmp.lt.s32.totalorder %s185, 7
      %s189 = scalar_select %p188, %s185, 7
      %s190 = smul.addr %s187, 8
      %s191 = sadd.s32 %s189, %s190
      %s192 = smul.addr %s191, 8
      %s193 = scalar_lea.vmem %s0, %s192
      %s194 = smul.u32 8, %s19
      %p195 = scmp.lt.s32.totalorder %s18, 1
      %s196 = scalar_select %p195, %s18, 1
      %p197 = scmp.lt.s32.totalorder %s20, 0
      %s198 = scalar_select %p197, %s20, 0
      %s199 = smul.addr %s196, 2
      %s200 = sadd.s32 %s198, %s199
      %s201 = smul.addr %s200, 8
      %s202 = scalar_lea.vmem %s1, %s201
      %p203 = scmp.lt.s32.totalorder %s18, 1
      %s204 = scalar_select %p203, %s18, 1
      %s205 = scalar_lea.vmem %s2, %s204
      %p206 = scmp.eq.s32.totalorder %s19, 0
      %p207 = scmp.eq.s32.totalorder %s20, 0
      %p208 = pnand %p206, %p207
      %p209 = pneg %p208
      // Predicated region
      $region29: #{chamfer_distance.1} parent=27 // pred_check
        _
      $region30: #{chamfer_distance.1} parent=27 // pred_check_branch
        %211 = sbr.rel (%p208) target = $region32
      $region31: #{chamfer_distance.1} parent=27 // pred_region
        %vm212 = vcmask 0
        %213 = vst.msk [vmem:[#allocation4] sm:$0x1] %vm212, 0.0
        %214 = vst.msk [vmem:[#allocation5] sm:$0x1] %vm212, 0.0
      $region32: #{chamfer_distance.1} parent=27 // pred_fallthru
        _
      %v215 = vld [vmem:[%s193] sm:$0xff]
      %v216 = vld [vmem:[%s193 + $0x8] sm:$0xff]
      %v217 = vld [vmem:[%s193 + $0x10] sm:$0xff]
      %v218 = vld [vmem:[%s193 + $0x18] sm:$0xff]
      %v219 = vld [vmem:[%s193 + $0x20] sm:$0xff]
      %v220 = vld [vmem:[%s193 + $0x28] sm:$0xff]
      %v221 = vld [vmem:[%s193 + $0x30] sm:$0xff]
      %v222 = vld [vmem:[%s193 + $0x38] sm:$0xff]
      %v223 = vld [vmem:[%s202] sm:$0xff]
      %v224 = vld [vmem:[%s202 + $0x8] sm:$0x3]
      %vm225 = vcmask 80896
      %v227 = vsel %vm225, %v215, 0
      %v230 = vsel %vm225, %v216, 0
      %v233 = vsel %vm225, %v217, 0
      %v236 = vsel %vm225, %v218, 0
      %v239 = vsel %vm225, %v219, 0
      %v242 = vsel %vm225, %v220, 0
      %v245 = vsel %vm225, %v221, 0
      %v248 = vsel %vm225, %v222, 0
      %vm250 = vcmask 1041408
      %v252 = vsel %vm250, %v224, 0
      %254 = vmatprep.subr.mxu0 0.0
      %255 = vmatpush1.msra.mxu0 0.0
      %256 = vmatprep.subr.mxu0 0.0
      %257 = vmatpush1.msra.mxu0 0.0
      %258 = vmatprep.subr.mxu0 0.0
      %259 = vmatpush1.msra.mxu0 0.0
      %260 = vmatprep.subr.mxu0 0.0
      %261 = vmatpush1.msra.mxu0 0.0
      %262 = vmatprep.subr.mxu0 0.0
      %263 = vmatpush1.msra.mxu0 0.0
      %264 = vmatprep.subr.mxu0 0.0
      %265 = vmatpush1.msra.mxu0 0.0
      %266 = vmatprep.subr.mxu0 0.0
      %267 = vmatpush1.msra.mxu0 0.0
      %268 = vmatprep.subr.mxu0 0.0
      %269 = vmatpush1.msra.mxu0 0.0
      %270 = vmatprep.subr.mxu0 0.0
      %271 = vmatpush1.msra.mxu0 0.0
      %272 = vmatprep.subr.mxu0 0.0
      %273 = vmatpush1.msra.mxu0 0.0
      %274 = vmatprep.subr.mxu0 0.0
      %275 = vmatpush1.msra.mxu0 0.0
      %276 = vmatprep.subr.mxu0 0.0
      %277 = vmatpush1.msra.mxu0 0.0
      %278 = vmatprep.subr.mxu0 0.0
      %279 = vmatpush1.msra.mxu0 0.0
      %280 = vmatprep.subr.mxu0 0.0
      %281 = vmatpush1.msra.mxu0 0.0
      %282 = vmatprep.subr.mxu0 0.0
      %283 = vmatpush1.msra.mxu0 %v252
      %284 = vmatprep.subr.mxu0 0.0
      %285 = vmatpush1.msra.mxu0 %v223
      %286 = vmatprep.subr.mxu0 0.0
      %287 = vmatpush2.msra.mxu0 0.0
      %288 = vmatprep.subr.mxu0 0.0
      %289 = vmatpush2.msra.mxu0 0.0
      %290 = vmatprep.subr.mxu0 0.0
      %291 = vmatpush2.msra.mxu0 0.0
      %292 = vmatprep.subr.mxu0 0.0
      %293 = vmatpush2.msra.mxu0 0.0
      %294 = vmatprep.subr.mxu0 0.0
      %295 = vmatpush2.msra.mxu0 0.0
      %296 = vmatprep.subr.mxu0 0.0
      %297 = vmatpush2.msra.mxu0 0.0
      %298 = vmatprep.subr.mxu0 0.0
      %299 = vmatpush2.msra.mxu0 0.0
      %300 = vmatprep.subr.mxu0 0.0
      %301 = vmatpush2.msra.mxu0 0.0
      %302 = vmatprep.subr.mxu0 0.0
      %303 = vmatpush2.msra.mxu0 0.0
      %304 = vmatprep.subr.mxu0 0.0
      %305 = vmatpush2.msra.mxu0 0.0
      %306 = vmatprep.subr.mxu0 0.0
      %307 = vmatpush2.msra.mxu0 0.0
      %308 = vmatprep.subr.mxu0 0.0
      %309 = vmatpush2.msra.mxu0 0.0
      %310 = vmatprep.subr.mxu0 0.0
      %311 = vmatpush2.msra.mxu0 0.0
      %312 = vmatprep.subr.mxu0 0.0
      %313 = vmatpush2.msra.mxu0 0.0
      %314 = vmatprep.subr.mxu0 0.0
      %315 = vmatpush2.msra.mxu0 0.0
      %316 = vmatprep.subr.mxu0 0.0
      %317 = vmatpush2.msra.mxu0 0.0
      %318 = vmatprep.mubr.f32.mxu0 0.0
      %319 = vmatmul.mubr.f32.gmra.mxu0 %v227
      %v320 = vpop.f32.mrf.mxu0
      %v321 = vadd.f32 0.0, %v320
      %v322 = vpop.f32.mrf.mxu0
      %323 = vmatprep.mubr.f32.mxu0 0.0
      %324 = vmatmul.mubr.f32.gmra.mxu0 %v230
      %v325 = vpop.f32.mrf.mxu0
      %v326 = vadd.f32 0.0, %v325
      %v327 = vpop.f32.mrf.mxu0
      %328 = vmatprep.mubr.f32.mxu0 0.0
      %329 = vmatmul.mubr.f32.gmra.mxu0 %v233
      %v330 = vpop.f32.mrf.mxu0
      %v331 = vadd.f32 0.0, %v330
      %v332 = vpop.f32.mrf.mxu0
      %333 = vmatprep.mubr.f32.mxu0 0.0
      %334 = vmatmul.mubr.f32.gmra.mxu0 %v236
      %v335 = vpop.f32.mrf.mxu0
      %v336 = vadd.f32 0.0, %v335
      %v337 = vpop.f32.mrf.mxu0
      %338 = vmatprep.mubr.f32.mxu0 0.0
      %339 = vmatmul.mubr.f32.gmra.mxu0 %v239
      %v340 = vpop.f32.mrf.mxu0
      %v341 = vadd.f32 0.0, %v340
      %v342 = vpop.f32.mrf.mxu0
      %343 = vmatprep.mubr.f32.mxu0 0.0
      %344 = vmatmul.mubr.f32.gmra.mxu0 %v242
      %v345 = vpop.f32.mrf.mxu0
      %v346 = vadd.f32 0.0, %v345
      %v347 = vpop.f32.mrf.mxu0
      %348 = vmatprep.mubr.f32.mxu0 0.0
      %349 = vmatmul.mubr.f32.gmra.mxu0 %v245
      %v350 = vpop.f32.mrf.mxu0
      %v351 = vadd.f32 0.0, %v350
      %v352 = vpop.f32.mrf.mxu0
      %353 = vmatprep.mubr.f32.mxu0 0.0
      %354 = vmatmul.mubr.f32.gmra.mxu0 %v248
      %v355 = vpop.f32.mrf.mxu0
      %v356 = vadd.f32 0.0, %v355
      %v357 = vpop.f32.mrf.mxu0
      %358 = vdwg.mxu0
      // Predicated region
      $region33: #{chamfer_distance.1} parent=27 // pred_check
        %p359 = pneg %p207
      $region34: #{chamfer_distance.1} parent=27 // pred_check_branch
        %361 = sbr.rel (%p359) target = $region36
      $region35: #{chamfer_distance.1} parent=27 // pred_region
        %362 = vst [vmem:[#allocation2] sm:$0xff] inf
        %363 = vst [vmem:[#allocation2 + $0x8] sm:$0xff] inf
        %364 = vst [vmem:[#allocation2 + $0x10] sm:$0xff] inf
        %365 = vst [vmem:[#allocation2 + $0x18] sm:$0xff] inf
        %366 = vst [vmem:[#allocation2 + $0x20] sm:$0xff] inf
        %367 = vst [vmem:[#allocation2 + $0x28] sm:$0xff] inf
        %368 = vst [vmem:[#allocation2 + $0x30] sm:$0xff] inf
        %369 = vst [vmem:[#allocation2 + $0x38] sm:$0xff] inf
      $region36: #{chamfer_distance.1} parent=27 // pred_fallthru
        _
      %v370 = vld [vmem:[#allocation2] sm:$0xff]
      %v371 = vld [vmem:[#allocation2 + $0x8] sm:$0xff]
      %v372 = vld [vmem:[#allocation2 + $0x10] sm:$0xff]
      %v373 = vld [vmem:[#allocation2 + $0x18] sm:$0xff]
      %v374 = vld [vmem:[#allocation2 + $0x20] sm:$0xff]
      %v375 = vld [vmem:[#allocation2 + $0x28] sm:$0xff]
      %v376 = vld [vmem:[#allocation2 + $0x30] sm:$0xff]
      %v377 = vld [vmem:[#allocation2 + $0x38] sm:$0xff]
      %v378 = vmin.f32 %v370, %v321
      %v379 = vmin.f32 %v371, %v326
      %v380 = vmin.f32 %v372, %v331
      %v381 = vmin.f32 %v373, %v336
      %v382 = vmin.f32 %v374, %v341
      %v383 = vmin.f32 %v375, %v346
      %v384 = vmin.f32 %v376, %v351
      %v385 = vmin.f32 %v377, %v356
      %386 = vst [vmem:[#allocation2] sm:$0xff] %v378
      %387 = vst [vmem:[#allocation2 + $0x8] sm:$0xff] %v379
      %388 = vst [vmem:[#allocation2 + $0x10] sm:$0xff] %v380
      %389 = vst [vmem:[#allocation2 + $0x18] sm:$0xff] %v381
      %390 = vst [vmem:[#allocation2 + $0x20] sm:$0xff] %v382
      %391 = vst [vmem:[#allocation2 + $0x28] sm:$0xff] %v383
      %392 = vst [vmem:[#allocation2 + $0x30] sm:$0xff] %v384
      %393 = vst [vmem:[#allocation2 + $0x38] sm:$0xff] %v385
      %v394 = vmin.f32 %v321, %v341
      %v395 = vmin.f32 %v326, %v346
      %v396 = vmin.f32 %v331, %v351
      %v397 = vmin.f32 %v336, %v356
      %v398 = vmin.f32 %v394, %v395
      %v399 = vmin.f32 %v396, %v397
      %v400 = vmin.f32 %v398, %v399
      // Predicated region
      $region37: #{chamfer_distance.1} parent=27 // pred_check
        %p401 = pneg %p206
      $region38: #{chamfer_distance.1} parent=27 // pred_check_branch
        %403 = sbr.rel (%p401) target = $region40
      $region39: #{chamfer_distance.1} parent=27 // pred_region
        %s404 = smul.u32 %s20, 8
        %s405 = scalar_lea.vmem [#allocation3], %s404
        %406 = vst [vmem:[%s405] sm:$0xff] inf
      $region40: #{chamfer_distance.1} parent=27 // pred_fallthru
        _
      %s407 = smul.u32 %s20, 8
      %s408 = scalar_lea.vmem [#allocation3], %s407
      %v409 = vld [vmem:[%s408] sm:$0xff]
      %v410 = vmin.f32 %v409, %v400
      %411 = vst [vmem:[%s408] sm:$0xff] %v410
      // Predicated region
      $region41: #{chamfer_distance.1} parent=27 // pred_check
        %p412 = pneg %p207
      $region42: #{chamfer_distance.1} parent=27 // pred_check_branch
        %414 = sbr.rel (%p412) target = $region44
      $region43: #{chamfer_distance.1} parent=27 // pred_region
        %v415 = vld [vmem:[#allocation2] sm:$0xff]
        %v416 = vld [vmem:[#allocation2 + $0x8] sm:$0xff]
        %v417 = vld [vmem:[#allocation2 + $0x10] sm:$0xff]
        %v418 = vld [vmem:[#allocation2 + $0x18] sm:$0xff]
        %v419 = vld [vmem:[#allocation2 + $0x20] sm:$0xff]
        %v420 = vld [vmem:[#allocation2 + $0x28] sm:$0xff]
        %v421 = vld [vmem:[#allocation2 + $0x30] sm:$0xff]
        %v422 = vld [vmem:[#allocation2 + $0x38] sm:$0xff]
        %423 = vmin.xlane.f32.xlu0 %v415
        %v424 = vpop.xlane.xlu0 %423
        %425 = vmin.xlane.f32.xlu0 %v416
        %v426 = vpop.xlane.xlu0 %425
        %427 = vmin.xlane.f32.xlu0 %v417
        %v428 = vpop.xlane.xlu0 %427
        %429 = vmin.xlane.f32.xlu0 %v418
        %v430 = vpop.xlane.xlu0 %429
        %431 = vmin.xlane.f32.xlu0 %v419
        %v432 = vpop.xlane.xlu0 %431
        %433 = vmin.xlane.f32.xlu0 %v420
        %v434 = vpop.xlane.xlu0 %433
        %435 = vmin.xlane.f32.xlu0 %v421
        %v436 = vpop.xlane.xlu0 %435
        %437 = vmin.xlane.f32.xlu0 %v422
        %v438 = vpop.xlane.xlu0 %437
        %v439 = vmax.f32 %v424, 0.0
        %v440 = vmax.f32 %v426, 0.0
        %v441 = vmax.f32 %v428, 0.0
        %v442 = vmax.f32 %v430, 0.0
        %v443 = vmax.f32 %v432, 0.0
        %v444 = vmax.f32 %v434, 0.0
        %v445 = vmax.f32 %v436, 0.0
        %v446 = vmax.f32 %v438, 0.0
        %v447 = vrsqrt.pop %v439
        %v448 = vmul.f32 %v439, %v447
        %vm449 = vcmp.eq.f32.partialorder %v439, inf
        %v450 = vsel %vm449, %v439, %v448
        %vm451 = vcmp.eq.f32.partialorder %v439, 0.0
        %v452 = vand.u32 %v439, 2147483648
        %v453 = vsel %vm451, %v452, %v450
        %v454 = vrsqrt.pop %v440
        %v455 = vmul.f32 %v440, %v454
        %vm456 = vcmp.eq.f32.partialorder %v440, inf
        %v457 = vsel %vm456, %v440, %v455
        %vm458 = vcmp.eq.f32.partialorder %v440, 0.0
        %v459 = vand.u32 %v440, 2147483648
        %v460 = vsel %vm458, %v459, %v457
        %v461 = vrsqrt.pop %v441
        %v462 = vmul.f32 %v441, %v461
        %vm463 = vcmp.eq.f32.partialorder %v441, inf
        %v464 = vsel %vm463, %v441, %v462
        %vm465 = vcmp.eq.f32.partialorder %v441, 0.0
        %v466 = vand.u32 %v441, 2147483648
        %v467 = vsel %vm465, %v466, %v464
        %v468 = vrsqrt.pop %v442
        %v469 = vmul.f32 %v442, %v468
        %vm470 = vcmp.eq.f32.partialorder %v442, inf
        %v471 = vsel %vm470, %v442, %v469
        %vm472 = vcmp.eq.f32.partialorder %v442, 0.0
        %v473 = vand.u32 %v442, 2147483648
        %v474 = vsel %vm472, %v473, %v471
        %v475 = vrsqrt.pop %v443
        %v476 = vmul.f32 %v443, %v475
        %vm477 = vcmp.eq.f32.partialorder %v443, inf
        %v478 = vsel %vm477, %v443, %v476
        %vm479 = vcmp.eq.f32.partialorder %v443, 0.0
        %v480 = vand.u32 %v443, 2147483648
        %v481 = vsel %vm479, %v480, %v478
        %v482 = vrsqrt.pop %v444
        %v483 = vmul.f32 %v444, %v482
        %vm484 = vcmp.eq.f32.partialorder %v444, inf
        %v485 = vsel %vm484, %v444, %v483
        %vm486 = vcmp.eq.f32.partialorder %v444, 0.0
        %v487 = vand.u32 %v444, 2147483648
        %v488 = vsel %vm486, %v487, %v485
        %v489 = vrsqrt.pop %v445
        %v490 = vmul.f32 %v445, %v489
        %vm491 = vcmp.eq.f32.partialorder %v445, inf
        %v492 = vsel %vm491, %v445, %v490
        %vm493 = vcmp.eq.f32.partialorder %v445, 0.0
        %v494 = vand.u32 %v445, 2147483648
        %v495 = vsel %vm493, %v494, %v492
        %v496 = vrsqrt.pop %v446
        %v497 = vmul.f32 %v446, %v496
        %vm498 = vcmp.eq.f32.partialorder %v446, inf
        %v499 = vsel %vm498, %v446, %v497
        %vm500 = vcmp.eq.f32.partialorder %v446, 0.0
        %v501 = vand.u32 %v446, 2147483648
        %v502 = vsel %vm500, %v501, %v499
        %v503 = vld [vmem:[#allocation4] sm:$0x1]
        %v504 = vadd.f32 %v453, %v460
        %v505 = vadd.f32 %v504, %v467
        %v506 = vadd.f32 %v505, %v474
        %v507 = vadd.f32 %v506, %v481
        %v508 = vadd.f32 %v507, %v488
        %v509 = vadd.f32 %v508, %v495
        %v510 = vadd.f32 %v509, %v502
        %v511 = vrot.slane %v510, 4
        %v512 = vadd.f32 %v510, %v511
        %v513 = vrot.slane %v512, 2
        %v514 = vadd.f32 %v512, %v513
        %v515 = vrot.slane %v514, 1
        %v516 = vadd.f32 %v514, %v515
        %v517 = vadd.f32 %v503, %v516
        %vm518 = vcmask 0
        %519 = vst.msk [vmem:[#allocation4] sm:$0x1] %vm518, %v517
      $region44: #{chamfer_distance.1} parent=27 // pred_fallthru
        _
      // Predicated region
      $region45: #{chamfer_distance.1} parent=27 // pred_check
        %p520 = pneg %p206
      $region46: #{chamfer_distance.1} parent=27 // pred_check_branch
        %522 = sbr.rel (%p520) target = $region48
      $region47: #{chamfer_distance.1} parent=27 // pred_region
        %v523 = vld [vmem:[%s408] sm:$0xff]
        %v524 = vrot.slane %v523, 4
        %v525 = vmin.f32 %v523, %v524
        %v526 = vrot.slane %v525, 2
        %v527 = vmin.f32 %v525, %v526
        %v528 = vrot.slane %v527, 1
        %v529 = vmin.f32 %v527, %v528
        %v530 = vmax.f32 %v529, 0.0
        %v531 = vrsqrt.pop %v530
        %v532 = vmul.f32 %v530, %v531
        %vm533 = vcmp.eq.f32.partialorder %v530, inf
        %v534 = vsel %vm533, %v530, %v532
        %vm535 = vcmp.eq.f32.partialorder %v530, 0.0
        %v536 = vand.u32 %v530, 2147483648
        %v537 = vsel %vm535, %v536, %v534
        %v538 = vld [vmem:[#allocation5] sm:$0x1]
        %539 = vadd.xlane.f32.xlu0 %v537
        %v540 = vpop.xlane.xlu0 %539
        %v541 = vadd.f32 %v538, %v540
        %vm542 = vcmask 0
        %543 = vst.msk [vmem:[#allocation5] sm:$0x1] %vm542, %v541
      $region48: #{chamfer_distance.1} parent=27 // pred_fallthru
        _
      // Predicated region
      $region49: #{chamfer_distance.1} parent=27 // pred_check
        _
      $region50: #{chamfer_distance.1} parent=27 // pred_check_branch
        %545 = sbr.rel (%p208) target = $region52
      $region51: #{chamfer_distance.1} parent=27 // pred_region
        %v546 = vld [vmem:[#allocation4] sm:$0x1]
        %v547 = vmul.f32 %v546, 0.015625
        %v548 = vld [vmem:[#allocation5] sm:$0x1]
        %v549 = vmul.f32 %v548, 0.0078125
        %v550 = vadd.f32 %v547, %v549
        %v551 = vmul.f32 %v550, 0.5
        %vm552 = vcmask 0
        %553 = vst.msk [vmem:[%s205] sm:$0x1] %vm552, %v551
      $region52: #{chamfer_distance.1} parent=27 // pred_fallthru
        _
      %p554 = scmp.lt.s32.totalorder %s18, 1
      %s555 = scalar_select %p554, %s18, 1
      %s556 = scalar_lea.vmem %s2, %s555
      // Predicated region
      $region53: #{chamfer_distance.1} parent=27 // pred_check
        %p557 = pneg %p106
      $region54: #{chamfer_distance.1} parent=27 // pred_check_branch
        %559 = sbr.rel (%p557) target = $region56
      $region55: #{chamfer_distance.1} parent=27 // pred_region
        _
      $region56: #{chamfer_distance.1} parent=27 // pred_fallthru
        _
    $region28: #{chamfer_distance.1} parent=5 // pred_fallthru
      _
    %p560 = scmp.le.s32.totalorder 2, %s8
    // Predicated region
    $region57: #{chamfer_distance.1} parent=5 // pred_check
      %p561 = pneg %p560
    $region58: #{chamfer_distance.1} parent=5 // pred_check_branch
      %563 = sbr.rel (%p561) target = $region60
    $region59: #{chamfer_distance.1} parent=5 // pred_region
      %s564 = ssub.s32 %s8, 2
      // Predicated region
      $region61: #{chamfer_distance.1} parent=59 // pred_check
        %p565 = pneg %p112
      $region62: #{chamfer_distance.1} parent=59 // pred_check_branch
        %567 = sbr.rel (%p565) target = $region64
      $region63: #{chamfer_distance.1} parent=59 // pred_region
        %p568 = scmp.lt.s32.totalorder %s21, 1
        %s569 = scalar_select %p568, %s21, 1
        %s570 = scalar_lea.vmem %s2, %s569
      $region64: #{chamfer_distance.1} parent=59 // pred_fallthru
        _
    $region60: #{chamfer_distance.1} parent=5 // pred_fallthru
      _
  $region6: #{chamfer_distance.1} parent=0 // loop_footer
    %s12 = sadd.s32 1, %s8
  $region7: #{chamfer_distance.1} parent=0 // loop_footer_branch
    %7 = sbr.rel target = $region3
  $region8: #{chamfer_distance.1} parent=0 // loop_exit
    _

</llo_original>
